<compile_context>
chip_gen: v6e
topology: v6e:2x2x1
jax: 0.10.0
libtpu: 0.0.40
codegen_flags: <defaults>
</compile_context>

<pallas_src>
import functools

import jax
import jax.numpy as jnp
from jax.experimental import pallas as pl
from jax.experimental.pallas import tpu as pltpu

LN_EPS = 1e-5


# --------------------------------------------------------------------------
# Kernels
# --------------------------------------------------------------------------
def gcb_stats_kernel(x_ref, wcm_ref, w1t_ref, b1_ref, g_ref, beta_ref,
                     w2_ref, b2_ref, gc_ref, m_sc, l_sc, acc_sc,
                     *, hw_valid, t_hw):
    t = pl.program_id(1)
    n_t = pl.num_programs(1)

    @pl.when(t == 0)
    def _():
        m_sc[...] = jnp.full(m_sc.shape, -jnp.inf, m_sc.dtype)
        l_sc[...] = jnp.zeros(l_sc.shape, l_sc.dtype)
        acc_sc[...] = jnp.zeros(acc_sc.shape, acc_sc.dtype)

    # Only this (TB, C, T) chunk is upcast to f32 — never the whole slab.
    x = x_ref[...].astype(jnp.float32)

    need_mask = (hw_valid % t_hw) != 0
    if need_mask:
        # Edge tile: lanes past HW hold unspecified data; mask them out.
        lane = jax.lax.broadcasted_iota(jnp.int32, (1, 1, t_hw), 2)
        valid = (t * t_hw + lane) < hw_valid
        x = jnp.where(valid, x, 0.0)

    # 1x1 conv C -> 1 as a VPU broadcast-mul + sublane reduce (no M=1 matmul).
    logits = jnp.sum(wcm_ref[...][None] * x, axis=1, keepdims=True)   # (TB,1,T)
    if need_mask:
        logits = jnp.where(valid, logits, -jnp.inf)

    # Online softmax update (per batch row).
    m_prev = m_sc[...]                                                # (TB,1,1)
    m_new = jnp.maximum(m_prev, jnp.max(logits, axis=-1, keepdims=True))
    corr = jnp.exp(m_prev - m_new)
    p = jnp.exp(logits - m_new)                                       # (TB,1,T)
    l_sc[...] = corr * l_sc[...] + jnp.sum(p, axis=-1, keepdims=True)
    acc_sc[...] = corr * acc_sc[...] + jnp.sum(x * p, axis=-1, keepdims=True)
    m_sc[...] = m_new

    @pl.when(t == n_t - 1)
    def _():
        # Attention-pooled context (exact divide; the vector is tiny).
        ctx = acc_sc[...] / l_sc[...]                                 # (TB,C,1)
        # Transform: conv1 -> LayerNorm(C_out) -> ReLU -> conv2, all VPU/XLU.
        h = jnp.sum(w1t_ref[...][None] * ctx, axis=1, keepdims=True)
        h = h + b1_ref[...][None]                                     # (TB,1,Cout)
        mu = jnp.mean(h, axis=-1, keepdims=True)
        var = jnp.mean((h - mu) ** 2, axis=-1, keepdims=True)
        h = (h - mu) * jax.lax.rsqrt(var + LN_EPS)
        h = h * g_ref[...][None] + beta_ref[...][None]
        h = jnp.maximum(h, 0.0)
        gc = jnp.sum(w2_ref[...][None] * h, axis=-1, keepdims=True)   # (TB,C,1)
        gc_ref[...] = (gc + b2_ref[...][None]).astype(gc_ref.dtype)


def gcb_residual_kernel(x_ref, gc_ref, y_ref):
    # Broadcast-add the per-(batch, channel) global context over the HW tile.
    # Stores to the out-of-bounds part of an edge tile are dropped by Pallas.
    y_ref[...] = (x_ref[...].astype(jnp.float32) + gc_ref[...]).astype(y_ref.dtype)


# --------------------------------------------------------------------------
# Wrapper
# --------------------------------------------------------------------------
def _vmem_capacity_bytes():
    try:
        cap = getattr(pltpu.get_tpu_info(), "vmem_capacity_bytes", None)
        if cap:
            return int(cap)
    except Exception:
        pass
    return 64 << 20   # conservative (v7x-sized) fallback


def _choose_tiles(B, C, HW, x_item, y_item, budget, max_hw_tile=None):
    """Pick (TB, T): batches per grid step and the HW tile length (lanes)."""
    hw128 = ((HW + 127) // 128) * 128
    # VMEM bytes per lane of tile per batch: double-buffered in + out blocks
    # plus the in-kernel f32 temporaries.
    per_lane_1b = C * (2 * x_item + 2 * y_item + 8)
    TB = 1
    if C * hw128 * max(x_item, y_item, 4) <= (512 << 10):
        # Small per-batch slab: block several batches per grid step.
        for cand in range(min(B, 8), 1, -1):
            if B % cand == 0 and cand * per_lane_1b * hw128 <= budget:
                TB = cand
                break
    t_cap = max(128, (budget // (TB * per_lane_1b)) // 128 * 128)
    if max_hw_tile is not None:
        t_cap = min(t_cap, max(128, (max_hw_tile // 128) * 128))
    if t_cap >= hw128:
        return TB, HW        # single full-extent tile (exempt from the 128 rule)
    return TB, t_cap


def global_context_block(x, params, *, out_dtype=None, donate_x=False,
                         max_hw_tile=None):
    """x: [B, C, H, W] (NCHW, same as the PyTorch module)."""
    wcm, bcm, w1, b1, g, beta, w2, b2 = params
    del bcm  # softmax shift-invariance: the C->1 conv bias has no effect.
    B, C, H, W = x.shape
    HW = H * W
    out_dtype = jnp.dtype(out_dtype or x.dtype)

    # Free metadata reshape; no pad, no cast — x stays in its native dtype.
    x2 = x.reshape(B, C, HW)
    x_item = x2.dtype.itemsize
    y_item = out_dtype.itemsize

    cap = _vmem_capacity_bytes()
    budget = min(int(0.30 * cap), 16 << 20)
    TB, T = _choose_tiles(B, C, HW, x_item, y_item, budget, max_hw_tile)
    n_bt = B // TB
    n_t = pl.cdiv(HW, T)

    c_out = w1.shape[0]
    # Parameter re-layout (tiny, f32, lane-dense for the transform chain).
    wcm_col = wcm.reshape(C, 1).astype(jnp.float32)        # (C, 1)
    w1_t = jnp.transpose(w1).astype(jnp.float32)           # (C, Cout)
    b1_row = b1.reshape(1, c_out).astype(jnp.float32)      # (1, Cout)
    g_row = g.reshape(1, c_out).astype(jnp.float32)
    beta_row = beta.reshape(1, c_out).astype(jnp.float32)
    w2_f = w2.astype(jnp.float32)                          # (C, Cout)
    b2_col = b2.reshape(C, 1).astype(jnp.float32)          # (C, 1)

    # VMEM limits from actual buffer sizes (+ headroom), capped per generation.
    param_bytes = 4 * (2 * C + 4 * c_out + 2 * C * c_out)
    chunk = TB * C * T
    vmem_stats = 2 * chunk * x_item + 3 * chunk * 4 + param_bytes + (4 << 20)
    vmem_resid = 2 * chunk * x_item + 2 * chunk * y_item + chunk * 4 + (4 << 20)
    vmem_cap = int(0.7 * cap)

    full2d = lambda a: pl.BlockSpec(a.shape, lambda b, t: (0, 0))

    # ---- Pass 1: online softmax stats + attention pool + transform -> gc ----
    stats = functools.partial(gcb_stats_kernel, hw_valid=HW, t_hw=T)
    gc = pl.pallas_call(
        stats,
        out_shape=jax.ShapeDtypeStruct((B, C, 1), jnp.float32),
        grid_spec=pltpu.PrefetchScalarGridSpec(
            num_scalar_prefetch=0,
            grid=(n_bt, n_t),
            in_specs=[
                pl.BlockSpec((TB, C, T), lambda b, t: (b, 0, t)),
                full2d(wcm_col), full2d(w1_t), full2d(b1_row),
                full2d(g_row), full2d(beta_row), full2d(w2_f), full2d(b2_col),
            ],
            out_specs=pl.BlockSpec((TB, C, 1), lambda b, t: (b, 0, 0)),
            scratch_shapes=[
                pltpu.VMEM((TB, 1, 1), jnp.float32),   # running max  m
                pltpu.VMEM((TB, 1, 1), jnp.float32),   # running denom l
                pltpu.VMEM((TB, C, 1), jnp.float32),   # running weighted sums
            ],
        ),
        compiler_params=pltpu.CompilerParams(
            dimension_semantics=("parallel", "arbitrary"),
            vmem_limit_bytes=int(min(max(vmem_stats, 8 << 20), vmem_cap)),
        ),
    )(x2, wcm_col, w1_t, b1_row, g_row, beta_row, w2_f, b2_col)

    # ---- Pass 2: residual add, streamed over the same HW tiles ----
    alias = {0: 0} if (donate_x and out_dtype == x2.dtype) else {}
    y = pl.pallas_call(
        gcb_residual_kernel,
        out_shape=jax.ShapeDtypeStruct((B, C, HW), out_dtype),
        grid_spec=pltpu.PrefetchScalarGridSpec(
            num_scalar_prefetch=0,
            grid=(n_bt, n_t),
            in_specs=[
                pl.BlockSpec((TB, C, T), lambda b, t: (b, 0, t)),
                pl.BlockSpec((TB, C, 1), lambda b, t: (b, 0, 0)),
            ],
            out_specs=pl.BlockSpec((TB, C, T), lambda b, t: (b, 0, t)),
        ),
        compiler_params=pltpu.CompilerParams(
            dimension_semantics=("parallel", "parallel"),
            vmem_limit_bytes=int(min(max(vmem_resid, 8 << 20), vmem_cap)),
        ),
        input_output_aliases=alias,
    )(x2, gc)

    return y.reshape(B, C, H, W)


# --------------------------------------------------------------------------
# Parameters + pure-JAX reference
# --------------------------------------------------------------------------
def init_params(key, in_channels, ratio=16):
    c_out = max(in_channels // ratio, 1)
    ks = jax.random.split(key, 6)
    # context_modeling.conv : Conv2d(C, 1, 1x1)
    wcm = jax.random.normal(ks[0], (1, in_channels), jnp.float32) * 0.1
    bcm = jax.random.normal(ks[1], (1, 1), jnp.float32) * 0.1
    # transform.conv1 : Conv2d(C, C//r, 1x1)
    w1 = jax.random.normal(ks[2], (c_out, in_channels), jnp.float32) * 0.1
    b1 = jax.random.normal(ks[3], (c_out, 1), jnp.float32) * 0.1
    # transform.norm : LayerNorm(C//r)
    g = jnp.ones((c_out, 1), jnp.float32)
    beta = jnp.zeros((c_out, 1), jnp.float32)
    # transform.conv2 : Conv2d(C//r, C, 1x1)
    w2 = jax.random.normal(ks[4], (in_channels, c_out), jnp.float32) * 0.1
    b2 = jax.random.normal(ks[5], (in_channels, 1), jnp.float32) * 0.1
    return (wcm, bcm, w1, b1, g, beta, w2, b2)


def reference(x, params):
    """Pure-JAX reference of the same semantics, for validation."""
    wcm, bcm, w1, b1, g, beta, w2, b2 = params
    B, C, H, W = x.shape
    x2 = x.reshape(B, C, H * W)
    logits = jnp.einsum('c,bcn->bn', wcm[0], x2) + bcm[0, 0]
    prob = jax.nn.softmax(logits, axis=-1)
    ctx = jnp.einsum('bcn,bn->bc', x2, prob)
    t = ctx @ w1.T + b1[:, 0]
    mu = t.mean(-1, keepdims=True)
    var = ((t - mu) ** 2).mean(-1, keepdims=True)
    t = (t - mu) / jnp.sqrt(var + LN_EPS) * g[:, 0] + beta[:, 0]
    t = jnp.maximum(t, 0.0)
    out = t @ w2.T + b2[:, 0]
    return x + out[:, :, None, None]


# --------------------------------------------------------------------------
# Demo / validation
# --------------------------------------------------------------------------
if __name__ == "__main__":
    key = jax.random.PRNGKey(0)
    kx1, kp1, kx2, kp2, kx3, kp3 = jax.random.split(key, 6)

    # Case 1: lane-aligned spatial (16*16 = 256), f32 end to end.
    B, C, H, W, ratio = 2, 32, 16, 16, 8
    x = jax.random.normal(kx1, (B, C, H, W), jnp.float32)
    params = init_params(kp1, C, ratio)
    y = jax.block_until_ready(global_context_block(x, params))
    y_ref = reference(x, params)
    assert y.shape == (B, C, H, W)
    assert jnp.allclose(y, y_ref, atol=1e-3, rtol=1e-3), "f32 mismatch vs reference"

    # Case 2: bf16 output (downcast only at the store; x stays f32 in HBM).
    y_bf16 = jax.block_until_ready(
        global_context_block(x, params, out_dtype=jnp.bfloat16))
    assert y_bf16.dtype == jnp.bfloat16
    assert jnp.allclose(y_bf16.astype(jnp.float32), y_ref, atol=5e-2, rtol=5e-2), \
        "bf16 mismatch vs reference"

    # Case 3: non-128-multiple HW (9*9 = 81): single full-extent tile, no pad,
    # no wrapper-side copies.
    B2, C2, H2, W2, ratio2 = 2, 16, 9, 9, 4
    x_odd = jax.random.normal(kx2, (B2, C2, H2, W2), jnp.float32)
    params_odd = init_params(kp2, C2, ratio2)
    y_odd = jax.block_until_ready(global_context_block(x_odd, params_odd))
    assert jnp.allclose(y_odd, reference(x_odd, params_odd), atol=1e-3, rtol=1e-3), \
        "odd-HW mismatch vs reference"

    # Case 4: forced HW tiling (20*20 = 400 -> four 128-lane tiles with a
    # masked partial edge tile, online softmax) plus batch blocking (TB=4).
    B3, C3, H3, W3, ratio3 = 4, 16, 20, 20, 4
    x_t = jax.random.normal(kx3, (B3, C3, H3, W3), jnp.float32)
    params_t = init_params(kp3, C3, ratio3)
    y_t = jax.block_until_ready(
        global_context_block(x_t, params_t, max_hw_tile=128))
    assert jnp.allclose(y_t, reference(x_t, params_t), atol=1e-3, rtol=1e-3), \
        "tiled-HW mismatch vs reference"

    print("KERNEL_OK")
</pallas_src>

<mosaic_0001>
module attributes {stable_mosaic.version = 11 : i64} {
  func.func @gcb_stats_kernel(%arg0: i32, %arg1: i32, %arg2: memref<2x32x256xf32, #tpu.memory_space<vmem>>, %arg3: memref<32x1xf32, #tpu.memory_space<vmem>>, %arg4: memref<32x4xf32, #tpu.memory_space<vmem>>, %arg5: memref<1x4xf32, #tpu.memory_space<vmem>>, %arg6: memref<1x4xf32, #tpu.memory_space<vmem>>, %arg7: memref<1x4xf32, #tpu.memory_space<vmem>>, %arg8: memref<32x4xf32, #tpu.memory_space<vmem>>, %arg9: memref<32x1xf32, #tpu.memory_space<vmem>>, %arg10: memref<2x32x1xf32, #tpu.memory_space<vmem>>, %arg11: memref<2x1x1xf32, #tpu.memory_space<vmem>>, %arg12: memref<2x1x1xf32, #tpu.memory_space<vmem>>, %arg13: memref<2x32x1xf32, #tpu.memory_space<vmem>>) attributes {dimension_semantics = [#tpu.dimension_semantics<parallel>, #tpu.dimension_semantics<arbitrary>], iteration_bounds = array<i64: 1, 1>, scalar_prefetch = 0 : i64, scratch_operands = 3 : i64, tpu.core_type = #tpu.core_type<tc>, window_params = [{transform_indices = @transform_0, window_bounds = array<i64: 2, 32, 256>}, {pipeline_mode = #tpu.pipeline_mode<synchronous>, transform_indices = @transform_1, window_bounds = array<i64: 32, 1>}, {pipeline_mode = #tpu.pipeline_mode<synchronous>, transform_indices = @transform_2, window_bounds = array<i64: 32, 4>}, {pipeline_mode = #tpu.pipeline_mode<synchronous>, transform_indices = @transform_3, window_bounds = array<i64: 1, 4>}, {pipeline_mode = #tpu.pipeline_mode<synchronous>, transform_indices = @transform_4, window_bounds = array<i64: 1, 4>}, {pipeline_mode = #tpu.pipeline_mode<synchronous>, transform_indices = @transform_5, window_bounds = array<i64: 1, 4>}, {pipeline_mode = #tpu.pipeline_mode<synchronous>, transform_indices = @transform_6, window_bounds = array<i64: 32, 4>}, {pipeline_mode = #tpu.pipeline_mode<synchronous>, transform_indices = @transform_7, window_bounds = array<i64: 32, 1>}, {transform_indices = @transform_8, window_bounds = array<i64: 2, 32, 1>}]} {
    %c0_i32 = arith.constant 0 : i32
    %0 = arith.cmpi eq, %arg1, %c0_i32 : i32
    %1 = arith.extui %0 : i1 to i32
    %c0_i32_0 = arith.constant 0 : i32
    %2 = arith.cmpi ne, %1, %c0_i32_0 : i32
    scf.if %2 {
      %cst_28 = arith.constant 0xFF800000 : f32
      %38 = vector.broadcast %cst_28 : f32 to vector<2x1x1xf32>
      %c0_29 = arith.constant 0 : index
      %c0_30 = arith.constant 0 : index
      %c0_31 = arith.constant 0 : index
      %39 = vector.load %arg11[%c0_29, %c0_30, %c0_31] : memref<2x1x1xf32, #tpu.memory_space<vmem>>, vector<2x1x1xf32>
      tpu.vector_store %arg11[%c0_29, %c0_30, %c0_31], %38 {strides = array<i32>} : memref<2x1x1xf32, #tpu.memory_space<vmem>>, vector<2x1x1xf32>,
      %cst_32 = arith.constant 0.000000e+00 : f32
      %40 = vector.broadcast %cst_32 : f32 to vector<2x1x1xf32>
      %c0_33 = arith.constant 0 : index
      %c0_34 = arith.constant 0 : index
      %c0_35 = arith.constant 0 : index
      %41 = vector.load %arg12[%c0_33, %c0_34, %c0_35] : memref<2x1x1xf32, #tpu.memory_space<vmem>>, vector<2x1x1xf32>
      tpu.vector_store %arg12[%c0_33, %c0_34, %c0_35], %40 {strides = array<i32>} : memref<2x1x1xf32, #tpu.memory_space<vmem>>, vector<2x1x1xf32>,
      %cst_36 = arith.constant 0.000000e+00 : f32
      %42 = vector.broadcast %cst_36 : f32 to vector<2x32x1xf32>
      %c0_37 = arith.constant 0 : index
      %c0_38 = arith.constant 0 : index
      %c0_39 = arith.constant 0 : index
      %43 = vector.load %arg13[%c0_37, %c0_38, %c0_39] : memref<2x32x1xf32, #tpu.memory_space<vmem>>, vector<2x32x1xf32>
      tpu.vector_store %arg13[%c0_37, %c0_38, %c0_39], %42 {strides = array<i32>} : memref<2x32x1xf32, #tpu.memory_space<vmem>>, vector<2x32x1xf32>,
    } else {
    }
    %c0 = arith.constant 0 : index
    %c0_1 = arith.constant 0 : index
    %c0_2 = arith.constant 0 : index
    %3 = vector.load %arg2[%c0, %c0_1, %c0_2] : memref<2x32x256xf32, #tpu.memory_space<vmem>>, vector<2x32x256xf32>
    %c0_3 = arith.constant 0 : index
    %c0_4 = arith.constant 0 : index
    %4 = vector.load %arg3[%c0_3, %c0_4] : memref<32x1xf32, #tpu.memory_space<vmem>>, vector<32x1xf32>
    %5 = vector.shape_cast %4 : vector<32x1xf32> to vector<1x32x1xf32>
    %6 = vector.broadcast %5 : vector<1x32x1xf32> to vector<2x32x256xf32>
    %7 = arith.mulf %6, %3 : vector<2x32x256xf32>
    %cst = arith.constant dense<0.000000e+00> : vector<2x256xf32>
    %8 = vector.multi_reduction <add>, %7, %cst [1] : vector<2x32x256xf32> to vector<2x256xf32>
    %9 = vector.shape_cast %8 : vector<2x256xf32> to vector<2x1x256xf32>
    %c0_5 = arith.constant 0 : index
    %c0_6 = arith.constant 0 : index
    %c0_7 = arith.constant 0 : index
    %10 = vector.load %arg11[%c0_5, %c0_6, %c0_7] : memref<2x1x1xf32, #tpu.memory_space<vmem>>, vector<2x1x1xf32>
    %cst_8 = arith.constant dense<0xFF800000> : vector<2x1xf32>
    %11 = vector.multi_reduction <maximumf>, %9, %cst_8 [2] : vector<2x1x256xf32> to vector<2x1xf32>
    %12 = vector.shape_cast %11 : vector<2x1xf32> to vector<2x1x1xf32>
    %13 = arith.maximumf %10, %12 : vector<2x1x1xf32>
    %14 = arith.subf %10, %13 : vector<2x1x1xf32>
    %15 = math.exp %14 : vector<2x1x1xf32>
    %16 = vector.broadcast %13 : vector<2x1x1xf32> to vector<2x1x256xf32>
    %17 = arith.subf %9, %16 : vector<2x1x256xf32>
    %18 = math.exp %17 : vector<2x1x256xf32>
    %c0_9 = arith.constant 0 : index
    %c0_10 = arith.constant 0 : index
    %c0_11 = arith.constant 0 : index
    %19 = vector.load %arg12[%c0_9, %c0_10, %c0_11] : memref<2x1x1xf32, #tpu.memory_space<vmem>>, vector<2x1x1xf32>
    %20 = arith.mulf %15, %19 : vector<2x1x1xf32>
    %cst_12 = arith.constant dense<0.000000e+00> : vector<2x1xf32>
    %21 = vector.multi_reduction <add>, %18, %cst_12 [2] : vector<2x1x256xf32> to vector<2x1xf32>
    %22 = vector.shape_cast %21 : vector<2x1xf32> to vector<2x1x1xf32>
    %23 = arith.addf %20, %22 : vector<2x1x1xf32>
    %c0_13 = arith.constant 0 : index
    %c0_14 = arith.constant 0 : index
    %c0_15 = arith.constant 0 : index
    %24 = vector.load %arg12[%c0_13, %c0_14, %c0_15] : memref<2x1x1xf32, #tpu.memory_space<vmem>>, vector<2x1x1xf32>
    tpu.vector_store %arg12[%c0_13, %c0_14, %c0_15], %23 {strides = array<i32>} : memref<2x1x1xf32, #tpu.memory_space<vmem>>, vector<2x1x1xf32>,
    %c0_16 = arith.constant 0 : index
    %c0_17 = arith.constant 0 : index
    %c0_18 = arith.constant 0 : index
    %25 = vector.load %arg13[%c0_16, %c0_17, %c0_18] : memref<2x32x1xf32, #tpu.memory_space<vmem>>, vector<2x32x1xf32>
    %26 = vector.broadcast %15 : vector<2x1x1xf32> to vector<2x32x1xf32>
    %27 = arith.mulf %26, %25 : vector<2x32x1xf32>
    %28 = vector.broadcast %18 : vector<2x1x256xf32> to vector<2x32x256xf32>
    %29 = arith.mulf %3, %28 : vector<2x32x256xf32>
    %cst_19 = arith.constant dense<0.000000e+00> : vector<2x32xf32>
    %30 = vector.multi_reduction <add>, %29, %cst_19 [2] : vector<2x32x256xf32> to vector<2x32xf32>
    %31 = vector.shape_cast %30 : vector<2x32xf32> to vector<2x32x1xf32>
    %32 = arith.addf %27, %31 : vector<2x32x1xf32>
    %c0_20 = arith.constant 0 : index
    %c0_21 = arith.constant 0 : index
    %c0_22 = arith.constant 0 : index
    %33 = vector.load %arg13[%c0_20, %c0_21, %c0_22] : memref<2x32x1xf32, #tpu.memory_space<vmem>>, vector<2x32x1xf32>
    tpu.vector_store %arg13[%c0_20, %c0_21, %c0_22], %32 {strides = array<i32>} : memref<2x32x1xf32, #tpu.memory_space<vmem>>, vector<2x32x1xf32>,
    %c0_23 = arith.constant 0 : index
    %c0_24 = arith.constant 0 : index
    %c0_25 = arith.constant 0 : index
    %34 = vector.load %arg11[%c0_23, %c0_24, %c0_25] : memref<2x1x1xf32, #tpu.memory_space<vmem>>, vector<2x1x1xf32>
    tpu.vector_store %arg11[%c0_23, %c0_24, %c0_25], %13 {strides = array<i32>} : memref<2x1x1xf32, #tpu.memory_space<vmem>>, vector<2x1x1xf32>,
    %c0_i32_26 = arith.constant 0 : i32
    %35 = arith.cmpi eq, %arg1, %c0_i32_26 : i32
    %36 = arith.extui %35 : i1 to i32
    %c0_i32_27 = arith.constant 0 : i32
    %37 = arith.cmpi ne, %36, %c0_i32_27 : i32
    scf.if %37 {
      %c0_28 = arith.constant 0 : index
      %c0_29 = arith.constant 0 : index
      %c0_30 = arith.constant 0 : index
      %38 = vector.load %arg13[%c0_28, %c0_29, %c0_30] : memref<2x32x1xf32, #tpu.memory_space<vmem>>, vector<2x32x1xf32>
      %c0_31 = arith.constant 0 : index
      %c0_32 = arith.constant 0 : index
      %c0_33 = arith.constant 0 : index
      %39 = vector.load %arg12[%c0_31, %c0_32, %c0_33] : memref<2x1x1xf32, #tpu.memory_space<vmem>>, vector<2x1x1xf32>
      %40 = vector.broadcast %39 : vector<2x1x1xf32> to vector<2x32x1xf32>
      %41 = arith.divf %38, %40 : vector<2x32x1xf32>
      %c0_34 = arith.constant 0 : index
      %c0_35 = arith.constant 0 : index
      %42 = vector.load %arg4[%c0_34, %c0_35] : memref<32x4xf32, #tpu.memory_space<vmem>>, vector<32x4xf32>
      %43 = vector.shape_cast %42 : vector<32x4xf32> to vector<1x32x4xf32>
      %44 = vector.broadcast %43 : vector<1x32x4xf32> to vector<2x32x4xf32>
      %45 = vector.broadcast %41 : vector<2x32x1xf32> to vector<2x32x4xf32>
      %46 = arith.mulf %44, %45 : vector<2x32x4xf32>
      %cst_36 = arith.constant dense<0.000000e+00> : vector<2x4xf32>
      %47 = vector.multi_reduction <add>, %46, %cst_36 [1] : vector<2x32x4xf32> to vector<2x4xf32>
      %48 = vector.shape_cast %47 : vector<2x4xf32> to vector<2x1x4xf32>
      %c0_37 = arith.constant 0 : index
      %c0_38 = arith.constant 0 : index
      %49 = vector.load %arg5[%c0_37, %c0_38] : memref<1x4xf32, #tpu.memory_space<vmem>>, vector<1x4xf32>
      %50 = vector.shape_cast %49 : vector<1x4xf32> to vector<1x1x4xf32>
      %51 = vector.broadcast %50 : vector<1x1x4xf32> to vector<2x1x4xf32>
      %52 = arith.addf %48, %51 : vector<2x1x4xf32>
      %cst_39 = arith.constant dense<0.000000e+00> : vector<2x1xf32>
      %53 = vector.multi_reduction <add>, %52, %cst_39 [2] : vector<2x1x4xf32> to vector<2x1xf32>
      %54 = vector.shape_cast %53 : vector<2x1xf32> to vector<2x1x1xf32>
      %cst_40 = arith.constant 4.000000e+00 : f32
      %55 = vector.broadcast %cst_40 : f32 to vector<2x1x1xf32>
      %56 = arith.divf %54, %55 : vector<2x1x1xf32>
      %57 = vector.broadcast %56 : vector<2x1x1xf32> to vector<2x1x4xf32>
      %58 = arith.subf %52, %57 : vector<2x1x4xf32>
      %59 = arith.mulf %58, %58 : vector<2x1x4xf32>
      %cst_41 = arith.constant dense<0.000000e+00> : vector<2x1xf32>
      %60 = vector.multi_reduction <add>, %59, %cst_41 [2] : vector<2x1x4xf32> to vector<2x1xf32>
      %61 = vector.shape_cast %60 : vector<2x1xf32> to vector<2x1x1xf32>
      %cst_42 = arith.constant 4.000000e+00 : f32
      %62 = vector.broadcast %cst_42 : f32 to vector<2x1x1xf32>
      %63 = arith.divf %61, %62 : vector<2x1x1xf32>
      %64 = vector.broadcast %56 : vector<2x1x1xf32> to vector<2x1x4xf32>
      %65 = arith.subf %52, %64 : vector<2x1x4xf32>
      %cst_43 = arith.constant 9.99999974E-6 : f32
      %66 = vector.broadcast %cst_43 : f32 to vector<2x1x1xf32>
      %67 = arith.addf %63, %66 : vector<2x1x1xf32>
      %68 = math.rsqrt %67 : vector<2x1x1xf32>
      %69 = vector.broadcast %68 : vector<2x1x1xf32> to vector<2x1x4xf32>
      %70 = arith.mulf %65, %69 : vector<2x1x4xf32>
      %c0_44 = arith.constant 0 : index
      %c0_45 = arith.constant 0 : index
      %71 = vector.load %arg6[%c0_44, %c0_45] : memref<1x4xf32, #tpu.memory_space<vmem>>, vector<1x4xf32>
      %72 = vector.shape_cast %71 : vector<1x4xf32> to vector<1x1x4xf32>
      %73 = vector.broadcast %72 : vector<1x1x4xf32> to vector<2x1x4xf32>
      %74 = arith.mulf %70, %73 : vector<2x1x4xf32>
      %c0_46 = arith.constant 0 : index
      %c0_47 = arith.constant 0 : index
      %75 = vector.load %arg7[%c0_46, %c0_47] : memref<1x4xf32, #tpu.memory_space<vmem>>, vector<1x4xf32>
      %76 = vector.shape_cast %75 : vector<1x4xf32> to vector<1x1x4xf32>
      %77 = vector.broadcast %76 : vector<1x1x4xf32> to vector<2x1x4xf32>
      %78 = arith.addf %74, %77 : vector<2x1x4xf32>
      %cst_48 = arith.constant 0.000000e+00 : f32
      %79 = vector.broadcast %cst_48 : f32 to vector<2x1x4xf32>
      %80 = arith.maximumf %78, %79 : vector<2x1x4xf32>
      %c0_49 = arith.constant 0 : index
      %c0_50 = arith.constant 0 : index
      %81 = vector.load %arg8[%c0_49, %c0_50] : memref<32x4xf32, #tpu.memory_space<vmem>>, vector<32x4xf32>
      %82 = vector.shape_cast %81 : vector<32x4xf32> to vector<1x32x4xf32>
      %83 = vector.broadcast %82 : vector<1x32x4xf32> to vector<2x32x4xf32>
      %84 = vector.broadcast %80 : vector<2x1x4xf32> to vector<2x32x4xf32>
      %85 = arith.mulf %83, %84 : vector<2x32x4xf32>
      %cst_51 = arith.constant dense<0.000000e+00> : vector<2x32xf32>
      %86 = vector.multi_reduction <add>, %85, %cst_51 [2] : vector<2x32x4xf32> to vector<2x32xf32>
      %87 = vector.shape_cast %86 : vector<2x32xf32> to vector<2x32x1xf32>
      %c0_52 = arith.constant 0 : index
      %c0_53 = arith.constant 0 : index
      %88 = vector.load %arg9[%c0_52, %c0_53] : memref<32x1xf32, #tpu.memory_space<vmem>>, vector<32x1xf32>
      %89 = vector.shape_cast %88 : vector<32x1xf32> to vector<1x32x1xf32>
      %90 = vector.broadcast %89 : vector<1x32x1xf32> to vector<2x32x1xf32>
      %91 = arith.addf %87, %90 : vector<2x32x1xf32>
      %c0_54 = arith.constant 0 : index
      %c0_55 = arith.constant 0 : index
      %c0_56 = arith.constant 0 : index
      %92 = vector.load %arg10[%c0_54, %c0_55, %c0_56] : memref<2x32x1xf32, #tpu.memory_space<vmem>>, vector<2x32x1xf32>
      tpu.vector_store %arg10[%c0_54, %c0_55, %c0_56], %91 {strides = array<i32>} : memref<2x32x1xf32, #tpu.memory_space<vmem>>, vector<2x32x1xf32>,
    } else {
    }
    return
  }
  func.func @transform_0(%arg0: i32, %arg1: i32) -> (i32, i32, i32) {
    %c0_i32 = arith.constant 0 : i32
    %c0_i32_0 = arith.constant 0 : i32
    return %arg0, %c0_i32, %arg1 : i32, i32, i32
  }
  func.func @transform_1(%arg0: i32, %arg1: i32) -> (i32, i32) {
    %c0_i32 = arith.constant 0 : i32
    %c0_i32_0 = arith.constant 0 : i32
    %c0_i32_1 = arith.constant 0 : i32
    return %c0_i32, %c0_i32_0 : i32, i32
  }
  func.func @transform_2(%arg0: i32, %arg1: i32) -> (i32, i32) {
    %c0_i32 = arith.constant 0 : i32
    %c0_i32_0 = arith.constant 0 : i32
    %c0_i32_1 = arith.constant 0 : i32
    return %c0_i32, %c0_i32_0 : i32, i32
  }
  func.func @transform_3(%arg0: i32, %arg1: i32) -> (i32, i32) {
    %c0_i32 = arith.constant 0 : i32
    %c0_i32_0 = arith.constant 0 : i32
    %c0_i32_1 = arith.constant 0 : i32
    return %c0_i32, %c0_i32_0 : i32, i32
  }
  func.func @transform_4(%arg0: i32, %arg1: i32) -> (i32, i32) {
    %c0_i32 = arith.constant 0 : i32
    %c0_i32_0 = arith.constant 0 : i32
    %c0_i32_1 = arith.constant 0 : i32
    return %c0_i32, %c0_i32_0 : i32, i32
  }
  func.func @transform_5(%arg0: i32, %arg1: i32) -> (i32, i32) {
    %c0_i32 = arith.constant 0 : i32
    %c0_i32_0 = arith.constant 0 : i32
    %c0_i32_1 = arith.constant 0 : i32
    return %c0_i32, %c0_i32_0 : i32, i32
  }
  func.func @transform_6(%arg0: i32, %arg1: i32) -> (i32, i32) {
    %c0_i32 = arith.constant 0 : i32
    %c0_i32_0 = arith.constant 0 : i32
    %c0_i32_1 = arith.constant 0 : i32
    return %c0_i32, %c0_i32_0 : i32, i32
  }
  func.func @transform_7(%arg0: i32, %arg1: i32) -> (i32, i32) {
    %c0_i32 = arith.constant 0 : i32
    %c0_i32_0 = arith.constant 0 : i32
    %c0_i32_1 = arith.constant 0 : i32
    return %c0_i32, %c0_i32_0 : i32, i32
  }
  func.func @transform_8(%arg0: i32, %arg1: i32) -> (i32, i32, i32) {
    %c0_i32 = arith.constant 0 : i32
    %c0_i32_0 = arith.constant 0 : i32
    %c0_i32_1 = arith.constant 0 : i32
    return %arg0, %c0_i32, %c0_i32_0 : i32, i32, i32
  }
}

</mosaic_0001>

<llo_original>
// kernel: tpu_custom_call.1
$region0: #{tpu_custom_call.1}
  #allocation0 [shape = 'u32[]', space=smem, size = 0x4, offset = 0x4, fixed_abs, tag = 'smem constant byte address 0x4 - core index']
  #allocation1 [shape = 'u32[144,128]{1,0:T(1,128)}', space=vmem, size = 0x12000, scoped, tag = 'internal scratch']
  #allocation2 [shape = 'f32[2,1,1]{2,1,0:T(1,128)}', space=vmem, size = 0x400, scoped, tag = 'scratch operand']
  #allocation3 [shape = 'f32[2,1,1]{2,1,0:T(1,128)}', space=vmem, size = 0x400, scoped, tag = 'scratch operand']
  #allocation4 [shape = 'f32[2,32,1]{2,1,0:T(8,128)}', space=vmem, size = 0x8000, scoped, tag = 'scratch operand']
  %s0 = inlined_call_operand.vmem [shape: f32[2,32,256], index: 0, kind: input, shape index: {}]
  %s1 = inlined_call_operand.vmem [shape: f32[32,1], index: 1, kind: input, shape index: {}]
  %s2 = inlined_call_operand.vmem [shape: f32[32,4], index: 2, kind: input, shape index: {}]
  %s3 = inlined_call_operand.vmem [shape: f32[1,4], index: 3, kind: input, shape index: {}]
  %s4 = inlined_call_operand.vmem [shape: f32[1,4], index: 4, kind: input, shape index: {}]
  %s5 = inlined_call_operand.vmem [shape: f32[1,4], index: 5, kind: input, shape index: {}]
  %s6 = inlined_call_operand.vmem [shape: f32[32,4], index: 6, kind: input, shape index: {}]
  %s7 = inlined_call_operand.vmem [shape: f32[32,1], index: 7, kind: input, shape index: {}]
  %s8 = inlined_call_operand.vmem [shape: f32[2,32,1], index: 8, kind: output, shape index: {}]
  %s9 = sld [smem:[#allocation0]]
  $region50: #{tpu_custom_call.1} parent=0
    _
  %s11 = ssub.s32 1, %s9
  %s12 = scalar_select 0, %s11, %s9
  // Predicated region
  $region2: #{tpu_custom_call.1} parent=0 // pred_check
    _
  $region3: #{tpu_custom_call.1} parent=0 // pred_check_branch
    %14 = sbr.rel (0) target = $region5
  $region4: #{tpu_custom_call.1} parent=0 // pred_region
    _
  $region5: #{tpu_custom_call.1} parent=0 // pred_fallthru
    _
  // Predicated region
  $region6: #{tpu_custom_call.1} parent=0 // pred_check
    _
  $region7: #{tpu_custom_call.1} parent=0 // pred_check_branch
    %16 = sbr.rel (0) target = $region9
  $region8: #{tpu_custom_call.1} parent=0 // pred_region
    _
  $region9: #{tpu_custom_call.1} parent=0 // pred_fallthru
    _
  // Predicated region
  $region10: #{tpu_custom_call.1} parent=0 // pred_check
    _
  $region11: #{tpu_custom_call.1} parent=0 // pred_check_branch
    %18 = sbr.rel (0) target = $region13
  $region12: #{tpu_custom_call.1} parent=0 // pred_region
    _
  $region13: #{tpu_custom_call.1} parent=0 // pred_fallthru
    _
  // Predicated region
  $region14: #{tpu_custom_call.1} parent=0 // pred_check
    _
  $region15: #{tpu_custom_call.1} parent=0 // pred_check_branch
    %20 = sbr.rel (0) target = $region17
  $region16: #{tpu_custom_call.1} parent=0 // pred_region
    _
  $region17: #{tpu_custom_call.1} parent=0 // pred_fallthru
    _
  // Predicated region
  $region18: #{tpu_custom_call.1} parent=0 // pred_check
    _
  $region19: #{tpu_custom_call.1} parent=0 // pred_check_branch
    %22 = sbr.rel (0) target = $region21
  $region20: #{tpu_custom_call.1} parent=0 // pred_region
    _
  $region21: #{tpu_custom_call.1} parent=0 // pred_fallthru
    _
  // Predicated region
  $region22: #{tpu_custom_call.1} parent=0 // pred_check
    _
  $region23: #{tpu_custom_call.1} parent=0 // pred_check_branch
    %24 = sbr.rel (0) target = $region25
  $region24: #{tpu_custom_call.1} parent=0 // pred_region
    _
  $region25: #{tpu_custom_call.1} parent=0 // pred_fallthru
    _
  // Predicated region
  $region26: #{tpu_custom_call.1} parent=0 // pred_check
    _
  $region27: #{tpu_custom_call.1} parent=0 // pred_check_branch
    %26 = sbr.rel (0) target = $region29
  $region28: #{tpu_custom_call.1} parent=0 // pred_region
    _
  $region29: #{tpu_custom_call.1} parent=0 // pred_fallthru
    _
  // Predicated region
  $region30: #{tpu_custom_call.1} parent=0 // pred_check
    _
  $region31: #{tpu_custom_call.1} parent=0 // pred_check_branch
    %28 = sbr.rel (0) target = $region33
  $region32: #{tpu_custom_call.1} parent=0 // pred_region
    _
  $region33: #{tpu_custom_call.1} parent=0 // pred_fallthru
    _
  %p29 = scmp.eq.s32.totalorder 0, 0
  // Predicated region
  $region34: #{tpu_custom_call.1} parent=0 // pred_check
    %p30 = pneg %p29
  $region35: #{tpu_custom_call.1} parent=0 // pred_check_branch
    %32 = sbr.rel (%p30) target = $region37
  $region36: #{tpu_custom_call.1} parent=0 // pred_region
    %vm33 = vcmask 0
    %34 = vst.msk [vmem:[#allocation2] sm:$0x1] %vm33, -inf
    %35 = vst.msk [vmem:[#allocation2 + $0x1] sm:$0x1] %vm33, -inf
    %36 = vst.msk [vmem:[#allocation3] sm:$0x1] %vm33, 0.0
    %37 = vst.msk [vmem:[#allocation3 + $0x1] sm:$0x1] %vm33, 0.0
    %vm38 = vcmask 7168
    %39 = vst.msk [vmem:[#allocation4] sm:$0xff] %vm38, 0.0
    %40 = vst.msk [vmem:[#allocation4 + $0x8] sm:$0xff] %vm38, 0.0
    %41 = vst.msk [vmem:[#allocation4 + $0x10] sm:$0xff] %vm38, 0.0
    %42 = vst.msk [vmem:[#allocation4 + $0x18] sm:$0xff] %vm38, 0.0
    %43 = vst.msk [vmem:[#allocation4 + $0x20] sm:$0xff] %vm38, 0.0
    %44 = vst.msk [vmem:[#allocation4 + $0x28] sm:$0xff] %vm38, 0.0
    %45 = vst.msk [vmem:[#allocation4 + $0x30] sm:$0xff] %vm38, 0.0
    %46 = vst.msk [vmem:[#allocation4 + $0x38] sm:$0xff] %vm38, 0.0
  $region37: #{tpu_custom_call.1} parent=0 // pred_fallthru
    _
  %v47 = vld [vmem:[%s0] sm:$0xff]
  %v48 = vld [vmem:[%s0 + $0x8] sm:$0xff]
  %v49 = vld [vmem:[%s0 + $0x10] sm:$0xff]
  %v50 = vld [vmem:[%s0 + $0x18] sm:$0xff]
  %v51 = vld [vmem:[%s0 + $0x20] sm:$0xff]
  %v52 = vld [vmem:[%s0 + $0x28] sm:$0xff]
  %v53 = vld [vmem:[%s0 + $0x30] sm:$0xff]
  %v54 = vld [vmem:[%s0 + $0x38] sm:$0xff]
  %v55 = vld [vmem:[%s0 + $0x40] sm:$0xff]
  %v56 = vld [vmem:[%s0 + $0x48] sm:$0xff]
  %v57 = vld [vmem:[%s0 + $0x50] sm:$0xff]
  %v58 = vld [vmem:[%s0 + $0x58] sm:$0xff]
  %v59 = vld [vmem:[%s0 + $0x60] sm:$0xff]
  %v60 = vld [vmem:[%s0 + $0x68] sm:$0xff]
  %v61 = vld [vmem:[%s0 + $0x70] sm:$0xff]
  %v62 = vld [vmem:[%s0 + $0x78] sm:$0xff]
  %v63 = vld [vmem:[%s1] sm:$0xff]
  %v64 = vld [vmem:[%s1 + $0x8] sm:$0xff]
  %v65 = vld [vmem:[%s1 + $0x10] sm:$0xff]
  %v66 = vld [vmem:[%s1 + $0x18] sm:$0xff]
  %68 = vset.pattern.permute.xlu0 0
  %69 = vperm.xlu0 %68, %v63
  %v70 = vpop.permute.xlu0 %69
  %73 = vset.pattern.permute.xlu0 0
  %74 = vperm.xlu0 %73, %v64
  %v75 = vpop.permute.xlu0 %74
  %78 = vset.pattern.permute.xlu0 0
  %79 = vperm.xlu0 %78, %v65
  %v80 = vpop.permute.xlu0 %79
  %83 = vset.pattern.permute.xlu0 0
  %84 = vperm.xlu0 %83, %v66
  %v85 = vpop.permute.xlu0 %84
  %v87 = vmul.f32 %v70, %v47
  %v88 = vmul.f32 %v70, %v48
  %v89 = vmul.f32 %v75, %v49
  %v90 = vmul.f32 %v75, %v50
  %v91 = vmul.f32 %v80, %v51
  %v92 = vmul.f32 %v80, %v52
  %v93 = vmul.f32 %v85, %v53
  %v94 = vmul.f32 %v85, %v54
  %v95 = vmul.f32 %v70, %v55
  %v96 = vmul.f32 %v70, %v56
  %v97 = vmul.f32 %v75, %v57
  %v98 = vmul.f32 %v75, %v58
  %v99 = vmul.f32 %v80, %v59
  %v100 = vmul.f32 %v80, %v60
  %v101 = vmul.f32 %v85, %v61
  %v102 = vmul.f32 %v85, %v62
  %v103 = vadd.f32 %v87, %v89
  %v104 = vadd.f32 %v103, %v91
  %v105 = vadd.f32 %v104, %v93
  %v106 = vrot.slane %v105, 4
  %v107 = vadd.f32 %v105, %v106
  %v108 = vrot.slane %v107, 2
  %v109 = vadd.f32 %v107, %v108
  %v110 = vrot.slane %v109, 1
  %v111 = vadd.f32 %v109, %v110
  %v112 = vadd.f32 %v88, %v90
  %v113 = vadd.f32 %v112, %v92
  %v114 = vadd.f32 %v113, %v94
  %v115 = vrot.slane %v114, 4
  %v116 = vadd.f32 %v114, %v115
  %v117 = vrot.slane %v116, 2
  %v118 = vadd.f32 %v116, %v117
  %v119 = vrot.slane %v118, 1
  %v120 = vadd.f32 %v118, %v119
  %v121 = vadd.f32 %v95, %v97
  %v122 = vadd.f32 %v121, %v99
  %v123 = vadd.f32 %v122, %v101
  %v124 = vrot.slane %v123, 4
  %v125 = vadd.f32 %v123, %v124
  %v126 = vrot.slane %v125, 2
  %v127 = vadd.f32 %v125, %v126
  %v128 = vrot.slane %v127, 1
  %v129 = vadd.f32 %v127, %v128
  %v130 = vadd.f32 %v96, %v98
  %v131 = vadd.f32 %v130, %v100
  %v132 = vadd.f32 %v131, %v102
  %v133 = vrot.slane %v132, 4
  %v134 = vadd.f32 %v132, %v133
  %v135 = vrot.slane %v134, 2
  %v136 = vadd.f32 %v134, %v135
  %v137 = vrot.slane %v136, 1
  %v138 = vadd.f32 %v136, %v137
  %v139 = vld [vmem:[#allocation2] sm:$0x1]
  %v140 = vld [vmem:[#allocation2 + $0x1] sm:$0x1]
  %v141 = vmax.f32 %v111, %v120
  %142 = vmax.xlane.f32.xlu0 %v141
  %v143 = vpop.xlane.xlu0 %142
  %v144 = vmax.f32 %v129, %v138
  %145 = vmax.xlane.f32.xlu0 %v144
  %v146 = vpop.xlane.xlu0 %145
  %v147 = vmax.f32 %v139, %v143
  %v148 = vmax.f32 %v140, %v146
  %v149 = vsub.f32 %v139, %v147
  %v150 = vsub.f32 %v140, %v148
  %v151 = vmul.f32 %v149, 1.442695
  %v152 = vpow.pop %v151
  %v153 = vmul.f32 %v150, 1.442695
  %v154 = vpow.pop %v153
  %156 = vset.pattern.permute.xlu0 0
  %157 = vperm.xlu0 %156, %v147
  %v158 = vpop.permute.xlu0 %157
  %v160 = vlaneseq
  %v161 = vshrl.u32 %v160, 7
  %v162 = vsub.s32 0, %v161
  %v163 = vrot.slane %v158, %v162
  %165 = vset.pattern.permute.xlu0 0
  %166 = vperm.xlu0 %165, %v148
  %v167 = vpop.permute.xlu0 %166
  %v169 = vlaneseq
  %v170 = vshrl.u32 %v169, 7
  %v171 = vsub.s32 0, %v170
  %v172 = vrot.slane %v167, %v171
  %v173 = vsub.f32 %v111, %v163
  %v174 = vsub.f32 %v120, %v163
  %v175 = vsub.f32 %v129, %v172
  %v176 = vsub.f32 %v138, %v172
  %v177 = vmul.f32 %v173, 1.442695
  %v178 = vpow.pop %v177
  %v179 = vmul.f32 %v174, 1.442695
  %v180 = vpow.pop %v179
  %v181 = vmul.f32 %v175, 1.442695
  %v182 = vpow.pop %v181
  %v183 = vmul.f32 %v176, 1.442695
  %v184 = vpow.pop %v183
  %v185 = vld [vmem:[#allocation3] sm:$0x1]
  %v186 = vld [vmem:[#allocation3 + $0x1] sm:$0x1]
  %v187 = vmul.f32 %v152, %v185
  %v188 = vmul.f32 %v154, %v186
  %v189 = vadd.f32 %v178, %v180
  %190 = vadd.xlane.f32.xlu0 %v189
  %v191 = vpop.xlane.xlu0 %190
  %v192 = vadd.f32 %v182, %v184
  %193 = vadd.xlane.f32.xlu0 %v192
  %v194 = vpop.xlane.xlu0 %193
  %v195 = vadd.f32 %v187, %v191
  %v196 = vadd.f32 %v188, %v194
  %vm197 = vcmask 0
  %198 = vst.msk [vmem:[#allocation3] sm:$0x1] %vm197, %v195
  %199 = vst.msk [vmem:[#allocation3 + $0x1] sm:$0x1] %vm197, %v196
  %v200 = vld [vmem:[#allocation4] sm:$0xff]
  %v201 = vld [vmem:[#allocation4 + $0x8] sm:$0xff]
  %v202 = vld [vmem:[#allocation4 + $0x10] sm:$0xff]
  %v203 = vld [vmem:[#allocation4 + $0x18] sm:$0xff]
  %v204 = vld [vmem:[#allocation4 + $0x20] sm:$0xff]
  %v205 = vld [vmem:[#allocation4 + $0x28] sm:$0xff]
  %v206 = vld [vmem:[#allocation4 + $0x30] sm:$0xff]
  %v207 = vld [vmem:[#allocation4 + $0x38] sm:$0xff]
  %v210 = vlaneseq
  %v211 = vshrl.u32 %v210, 7
  %v212 = vsub.s32 0, %v211
  %v213 = vrot.slane %v152, %v212
  %v214 = vlaneseq
  %v215 = vshrl.u32 %v214, 7
  %v216 = vsub.s32 0, %v215
  %v217 = vrot.slane %v154, %v216
  %v220 = vmul.f32 %v213, %v200
  %v221 = vmul.f32 %v213, %v201
  %v222 = vmul.f32 %v213, %v202
  %v223 = vmul.f32 %v213, %v203
  %v224 = vmul.f32 %v217, %v204
  %v225 = vmul.f32 %v217, %v205
  %v226 = vmul.f32 %v217, %v206
  %v227 = vmul.f32 %v217, %v207
  %v228 = vmul.f32 %v47, %v178
  %v229 = vmul.f32 %v48, %v180
  %v230 = vmul.f32 %v49, %v178
  %v231 = vmul.f32 %v50, %v180
  %v232 = vmul.f32 %v51, %v178
  %v233 = vmul.f32 %v52, %v180
  %v234 = vmul.f32 %v53, %v178
  %v235 = vmul.f32 %v54, %v180
  %v236 = vmul.f32 %v55, %v182
  %v237 = vmul.f32 %v56, %v184
  %v238 = vmul.f32 %v57, %v182
  %v239 = vmul.f32 %v58, %v184
  %v240 = vmul.f32 %v59, %v182
  %v241 = vmul.f32 %v60, %v184
  %v242 = vmul.f32 %v61, %v182
  %v243 = vmul.f32 %v62, %v184
  %v244 = vadd.f32 %v228, %v229
  %245 = vadd.xlane.f32.xlu0 %v244
  %v246 = vpop.xlane.xlu0 %245
  %v247 = vadd.f32 %v230, %v231
  %248 = vadd.xlane.f32.xlu0 %v247
  %v249 = vpop.xlane.xlu0 %248
  %v250 = vadd.f32 %v232, %v233
  %251 = vadd.xlane.f32.xlu0 %v250
  %v252 = vpop.xlane.xlu0 %251
  %v253 = vadd.f32 %v234, %v235
  %254 = vadd.xlane.f32.xlu0 %v253
  %v255 = vpop.xlane.xlu0 %254
  %v256 = vadd.f32 %v236, %v237
  %257 = vadd.xlane.f32.xlu0 %v256
  %v258 = vpop.xlane.xlu0 %257
  %v259 = vadd.f32 %v238, %v239
  %260 = vadd.xlane.f32.xlu0 %v259
  %v261 = vpop.xlane.xlu0 %260
  %v262 = vadd.f32 %v240, %v241
  %263 = vadd.xlane.f32.xlu0 %v262
  %v264 = vpop.xlane.xlu0 %263
  %v265 = vadd.f32 %v242, %v243
  %266 = vadd.xlane.f32.xlu0 %v265
  %v267 = vpop.xlane.xlu0 %266
  %v268 = vadd.f32 %v220, %v246
  %v269 = vadd.f32 %v221, %v249
  %v270 = vadd.f32 %v222, %v252
  %v271 = vadd.f32 %v223, %v255
  %v272 = vadd.f32 %v224, %v258
  %v273 = vadd.f32 %v225, %v261
  %v274 = vadd.f32 %v226, %v264
  %v275 = vadd.f32 %v227, %v267
  %vm276 = vcmask 7168
  %277 = vst.msk [vmem:[#allocation4] sm:$0xff] %vm276, %v268
  %278 = vst.msk [vmem:[#allocation4 + $0x8] sm:$0xff] %vm276, %v269
  %279 = vst.msk [vmem:[#allocation4 + $0x10] sm:$0xff] %vm276, %v270
  %280 = vst.msk [vmem:[#allocation4 + $0x18] sm:$0xff] %vm276, %v271
  %281 = vst.msk [vmem:[#allocation4 + $0x20] sm:$0xff] %vm276, %v272
  %282 = vst.msk [vmem:[#allocation4 + $0x28] sm:$0xff] %vm276, %v273
  %283 = vst.msk [vmem:[#allocation4 + $0x30] sm:$0xff] %vm276, %v274
  %284 = vst.msk [vmem:[#allocation4 + $0x38] sm:$0xff] %vm276, %v275
  %285 = vst.msk [vmem:[#allocation2] sm:$0x1] %vm197, %v147
  %286 = vst.msk [vmem:[#allocation2 + $0x1] sm:$0x1] %vm197, %v148
  // Predicated region
  $region38: #{tpu_custom_call.1} parent=0 // pred_check
    %p287 = pneg %p29
  $region39: #{tpu_custom_call.1} parent=0 // pred_check_branch
    %289 = sbr.rel (%p287) target = $region41
  $region40: #{tpu_custom_call.1} parent=0 // pred_region
    %v290 = vld [vmem:[#allocation4] sm:$0xff]
    %v291 = vld [vmem:[#allocation4 + $0x8] sm:$0xff]
    %v292 = vld [vmem:[#allocation4 + $0x10] sm:$0xff]
    %v293 = vld [vmem:[#allocation4 + $0x18] sm:$0xff]
    %v294 = vld [vmem:[#allocation4 + $0x20] sm:$0xff]
    %v295 = vld [vmem:[#allocation4 + $0x28] sm:$0xff]
    %v296 = vld [vmem:[#allocation4 + $0x30] sm:$0xff]
    %v297 = vld [vmem:[#allocation4 + $0x38] sm:$0xff]
    %v298 = vld [vmem:[#allocation3] sm:$0x1]
    %v299 = vld [vmem:[#allocation3 + $0x1] sm:$0x1]
    %v302 = vlaneseq
    %v303 = vshrl.u32 %v302, 7
    %v304 = vsub.s32 0, %v303
    %v305 = vrot.slane %v298, %v304
    %v306 = vlaneseq
    %v307 = vshrl.u32 %v306, 7
    %v308 = vsub.s32 0, %v307
    %v309 = vrot.slane %v299, %v308
    %v312 = vrcp.pop %v305
    %v313 = vmul.f32 %v290, %v312
    %v314 = vmul.f32 %v291, %v312
    %v315 = vmul.f32 %v292, %v312
    %v316 = vmul.f32 %v293, %v312
    %v317 = vrcp.pop %v309
    %v318 = vmul.f32 %v294, %v317
    %v319 = vmul.f32 %v295, %v317
    %v320 = vmul.f32 %v296, %v317
    %v321 = vmul.f32 %v297, %v317
    %v322 = vld [vmem:[%s2] sm:$0xff]
    %v323 = vld [vmem:[%s2 + $0x8] sm:$0xff]
    %v324 = vld [vmem:[%s2 + $0x10] sm:$0xff]
    %v325 = vld [vmem:[%s2 + $0x18] sm:$0xff]
    %327 = vset.pattern.permute.xlu0 0
    %328 = vperm.xlu0 %327, %v313
    %v329 = vpop.permute.xlu0 %328
    %332 = vset.pattern.permute.xlu0 0
    %333 = vperm.xlu0 %332, %v314
    %v334 = vpop.permute.xlu0 %333
    %337 = vset.pattern.permute.xlu0 0
    %338 = vperm.xlu0 %337, %v315
    %v339 = vpop.permute.xlu0 %338
    %342 = vset.pattern.permute.xlu0 0
    %343 = vperm.xlu0 %342, %v316
    %v344 = vpop.permute.xlu0 %343
    %347 = vset.pattern.permute.xlu0 0
    %348 = vperm.xlu0 %347, %v318
    %v349 = vpop.permute.xlu0 %348
    %352 = vset.pattern.permute.xlu0 0
    %353 = vperm.xlu0 %352, %v319
    %v354 = vpop.permute.xlu0 %353
    %357 = vset.pattern.permute.xlu0 0
    %358 = vperm.xlu0 %357, %v320
    %v359 = vpop.permute.xlu0 %358
    %362 = vset.pattern.permute.xlu0 0
    %363 = vperm.xlu0 %362, %v321
    %v364 = vpop.permute.xlu0 %363
    %v366 = vmul.f32 %v322, %v329
    %v367 = vmul.f32 %v323, %v334
    %v368 = vmul.f32 %v324, %v339
    %v369 = vmul.f32 %v325, %v344
    %v370 = vmul.f32 %v322, %v349
    %v371 = vmul.f32 %v323, %v354
    %v372 = vmul.f32 %v324, %v359
    %v373 = vmul.f32 %v325, %v364
    %vm374 = vcmask 31744
    %v375 = vsel %vm374, %v366, 0.0
    %v376 = vsel %vm374, %v367, 0.0
    %v377 = vadd.f32 %v375, %v376
    %v378 = vsel %vm374, %v368, 0.0
    %v379 = vadd.f32 %v377, %v378
    %v380 = vsel %vm374, %v369, 0.0
    %v381 = vadd.f32 %v379, %v380
    %v382 = vrot.slane %v381, 4
    %v383 = vadd.f32 %v381, %v382
    %v384 = vrot.slane %v383, 2
    %v385 = vadd.f32 %v383, %v384
    %v386 = vrot.slane %v385, 1
    %v387 = vadd.f32 %v385, %v386
    %v388 = vsel %vm374, %v370, 0.0
    %v389 = vsel %vm374, %v371, 0.0
    %v390 = vadd.f32 %v388, %v389
    %v391 = vsel %vm374, %v372, 0.0
    %v392 = vadd.f32 %v390, %v391
    %v393 = vsel %vm374, %v373, 0.0
    %v394 = vadd.f32 %v392, %v393
    %v395 = vrot.slane %v394, 4
    %v396 = vadd.f32 %v394, %v395
    %v397 = vrot.slane %v396, 2
    %v398 = vadd.f32 %v396, %v397
    %v399 = vrot.slane %v398, 1
    %v400 = vadd.f32 %v398, %v399
    %v401 = vld [vmem:[%s3] sm:$0x1]
    %v402 = vadd.f32 %v387, %v401
    %v403 = vadd.f32 %v400, %v401
    %vm404 = vcmask 24576
    %v405 = vsel %vm404, %v402, 0.0
    %406 = vadd.xlane.f32.xlu0 %v405
    %v407 = vpop.xlane.xlu0 %406
    %v408 = vsel %vm404, %v403, 0.0
    %409 = vadd.xlane.f32.xlu0 %v408
    %v410 = vpop.xlane.xlu0 %409
    %v411 = vrcp.pop 4.0
    %v412 = vmul.f32 %v407, %v411
    %v413 = vmul.f32 %v410, %v411
    %v414 = vsub.f32 %v402, %v412
    %v415 = vsub.f32 %v403, %v413
    %v416 = vmul.f32 %v414, %v414
    %v417 = vmul.f32 %v415, %v415
    %v418 = vsel %vm404, %v416, 0.0
    %419 = vadd.xlane.f32.xlu0 %v418
    %v420 = vpop.xlane.xlu0 %419
    %v421 = vsel %vm404, %v417, 0.0
    %422 = vadd.xlane.f32.xlu0 %v421
    %v423 = vpop.xlane.xlu0 %422
    %v424 = vmul.f32 %v420, %v411
    %v425 = vmul.f32 %v423, %v411
    %v426 = vadd.f32 %v424, 1e-05
    %v427 = vadd.f32 %v425, 1e-05
    %v428 = vrsqrt.pop %v426
    %v429 = vrsqrt.pop %v427
    %v430 = vmul.f32 %v414, %v428
    %v431 = vmul.f32 %v415, %v429
    %v432 = vld [vmem:[%s4] sm:$0x1]
    %v433 = vmul.f32 %v430, %v432
    %v434 = vmul.f32 %v431, %v432
    %v435 = vld [vmem:[%s5] sm:$0x1]
    %v436 = vadd.f32 %v433, %v435
    %v437 = vadd.f32 %v434, %v435
    %v438 = vmax.f32 %v436, 0.0
    %v439 = vmax.f32 %v437, 0.0
    %v440 = vld [vmem:[%s6] sm:$0xff]
    %v441 = vld [vmem:[%s6 + $0x8] sm:$0xff]
    %v442 = vld [vmem:[%s6 + $0x10] sm:$0xff]
    %v443 = vld [vmem:[%s6 + $0x18] sm:$0xff]
    %v444 = vlaneseq
    %v445 = vshrl.u32 %v444, 7
    %v446 = vsub.s32 0, %v445
    %v447 = vrot.slane %v438, %v446
    %v448 = vlaneseq
    %v449 = vshrl.u32 %v448, 7
    %v450 = vsub.s32 0, %v449
    %v451 = vrot.slane %v439, %v450
    %v452 = vmul.f32 %v440, %v447
    %v453 = vmul.f32 %v441, %v447
    %v454 = vmul.f32 %v442, %v447
    %v455 = vmul.f32 %v443, %v447
    %v456 = vmul.f32 %v440, %v451
    %v457 = vmul.f32 %v441, %v451
    %v458 = vmul.f32 %v442, %v451
    %v459 = vmul.f32 %v443, %v451
    %v460 = vsel %vm374, %v452, 0.0
    %461 = vadd.xlane.f32.xlu0 %v460
    %v462 = vpop.xlane.xlu0 %461
    %v463 = vsel %vm374, %v453, 0.0
    %464 = vadd.xlane.f32.xlu0 %v463
    %v465 = vpop.xlane.xlu0 %464
    %v466 = vsel %vm374, %v454, 0.0
    %467 = vadd.xlane.f32.xlu0 %v466
    %v468 = vpop.xlane.xlu0 %467
    %v469 = vsel %vm374, %v455, 0.0
    %470 = vadd.xlane.f32.xlu0 %v469
    %v471 = vpop.xlane.xlu0 %470
    %v472 = vsel %vm374, %v456, 0.0
    %473 = vadd.xlane.f32.xlu0 %v472
    %v474 = vpop.xlane.xlu0 %473
    %v475 = vsel %vm374, %v457, 0.0
    %476 = vadd.xlane.f32.xlu0 %v475
    %v477 = vpop.xlane.xlu0 %476
    %v478 = vsel %vm374, %v458, 0.0
    %479 = vadd.xlane.f32.xlu0 %v478
    %v480 = vpop.xlane.xlu0 %479
    %v481 = vsel %vm374, %v459, 0.0
    %482 = vadd.xlane.f32.xlu0 %v481
    %v483 = vpop.xlane.xlu0 %482
    %v484 = vld [vmem:[%s7] sm:$0xff]
    %v485 = vld [vmem:[%s7 + $0x8] sm:$0xff]
    %v486 = vld [vmem:[%s7 + $0x10] sm:$0xff]
    %v487 = vld [vmem:[%s7 + $0x18] sm:$0xff]
    %v488 = vadd.f32 %v462, %v484
    %v489 = vadd.f32 %v465, %v485
    %v490 = vadd.f32 %v468, %v486
    %v491 = vadd.f32 %v471, %v487
    %v492 = vadd.f32 %v474, %v484
    %v493 = vadd.f32 %v477, %v485
    %v494 = vadd.f32 %v480, %v486
    %v495 = vadd.f32 %v483, %v487
    %496 = vst.msk [vmem:[%s8] sm:$0xff] %vm276, %v488
    %497 = vst.msk [vmem:[%s8 + $0x8] sm:$0xff] %vm276, %v489
    %498 = vst.msk [vmem:[%s8 + $0x10] sm:$0xff] %vm276, %v490
    %499 = vst.msk [vmem:[%s8 + $0x18] sm:$0xff] %vm276, %v491
    %500 = vst.msk [vmem:[%s8 + $0x20] sm:$0xff] %vm276, %v492
    %501 = vst.msk [vmem:[%s8 + $0x28] sm:$0xff] %vm276, %v493
    %502 = vst.msk [vmem:[%s8 + $0x30] sm:$0xff] %vm276, %v494
    %503 = vst.msk [vmem:[%s8 + $0x38] sm:$0xff] %vm276, %v495
  $region41: #{tpu_custom_call.1} parent=0 // pred_fallthru
    _
  // Predicated region
  $region42: #{tpu_custom_call.1} parent=0 // pred_check
    _
  $region43: #{tpu_custom_call.1} parent=0 // pred_check_branch
    %505 = sbr.rel (0) target = $region45
  $region44: #{tpu_custom_call.1} parent=0 // pred_region
    _
  $region45: #{tpu_custom_call.1} parent=0 // pred_fallthru
    _
  // Predicated region
  $region46: #{tpu_custom_call.1} parent=0 // pred_check
    _
  $region47: #{tpu_custom_call.1} parent=0 // pred_check_branch
    %507 = sbr.rel (0) target = $region49
  $region48: #{tpu_custom_call.1} parent=0 // pred_region
    _
  $region49: #{tpu_custom_call.1} parent=0 // pred_fallthru
    _

</llo_original>
